<compile_context>
chip_gen: v7x
topology: tpu7x:2x2x1
jax: 0.10.0
libtpu: 0.0.40
codegen_flags: <defaults>
</compile_context>

<pallas_src>
import functools

import jax
import jax.numpy as jnp
from jax.experimental import pallas as pl
from jax.experimental.pallas import tpu as pltpu  # noqa: F401  (TPU backend)


def _round_up(x: int, m: int) -> int:
    return ((x + m - 1) // m) * m


def _fused_mlp_kernel(x_ref, w_ref, b_ref, o_ref, *, num_layers: int):
    """Whole head stack fused: chained (h @ W_l + b_l [+ ReLU]).

    x_ref: [Bp, Dp]           (f32, zero-padded input features)
    w_ref: [L, Dp, Dp]        (f32 or bf16, zero-padded weights, [in, out])
    b_ref: [L, 1, Dp]         (f32, zero-padded biases)
    o_ref: [Bp, Dp]           (f32, lane-dense output; real cols sliced outside)
    """
    compute_dtype = w_ref.dtype
    h = x_ref[...].astype(jnp.float32)
    for l in range(num_layers):  # static unroll; L is tiny
        y = jnp.dot(h.astype(compute_dtype), w_ref[l],
                    preferred_element_type=jnp.float32)
        y = y + b_ref[l]                       # [1, Dp] broadcast, f32 epilogue
        if l != num_layers - 1:
            y = jnp.maximum(y, 0.0)            # ReLU on all but the last layer
        h = y
    o_ref[...] = h.astype(o_ref.dtype)


def fused_heads_pallas(x, w_stack, b_stack):
    """x: [B, Din]; w_stack: [L, Dp, Dp]; b_stack: [L, 1, Dp] -> [Bp, Dp] f32."""
    L, Dp, _ = w_stack.shape
    B, Din = x.shape
    Bp = _round_up(max(B, 1), 8)               # sublane-aligned batch
    # Zero-pad input to the lane-dense kernel layout (padded cols stay 0
    # through every layer because the padded weight/bias entries are 0).
    xp = jnp.zeros((Bp, Dp), jnp.float32).at[:B, :Din].set(
        x.astype(jnp.float32))

    kernel = functools.partial(_fused_mlp_kernel, num_layers=L)
    return pl.pallas_call(
        kernel,
        out_shape=jax.ShapeDtypeStruct((Bp, Dp), jnp.float32),
        # Everything fits comfortably in VMEM at these sizes: full-array blocks.
        in_specs=[
            pl.BlockSpec((Bp, Dp), lambda: (0, 0)),
            pl.BlockSpec((L, Dp, Dp), lambda: (0, 0, 0)),
            pl.BlockSpec((L, 1, Dp), lambda: (0, 0, 0)),
        ],
        out_specs=pl.BlockSpec((Bp, Dp), lambda: (0, 0)),
    )(xp, w_stack, b_stack)
    # TODO(synk): for realistic fmcib widths (e.g. 4096-d trunk features) on
    # v7x (64 MiB VMEM), switch to a tiled (M,N,K) grid with an f32 acc
    # scratch and explicit vmem_limit_bytes instead of full-array blocks.


def init_heads_params(heads, key):
    """PyTorch-style init of nn.Linear(heads[i], heads[i+1], bias=True).

    W stored as [in, out] (kernel layout); bias as [out]."""
    params = []
    for idx in range(len(heads) - 1):
        din, dout = heads[idx], heads[idx + 1]
        key, kw, kb = jax.random.split(key, 3)
        bound = 1.0 / float(din) ** 0.5
        w = jax.random.uniform(kw, (din, dout), jnp.float32, -bound, bound)
        b = jax.random.uniform(kb, (dout,), jnp.float32, -bound, bound)
        params.append((w, b))
    return params


def pack_head_params(params, *, weight_dtype=jnp.float32):
    """Zero-pad every layer to one lane-dense width Dp (multiple of 128) and
    stack into a single weight tensor + a single bias tensor (one DMA each).

    Use weight_dtype=jnp.bfloat16 on v6e/v7x to halve weight DMA bytes
    (f32 accumulation is kept inside the kernel)."""
    dims = [params[0][0].shape[0]] + [w.shape[1] for w, _ in params]
    Dp = max(_round_up(d, 128) for d in dims)
    L = len(params)
    w_stack = jnp.zeros((L, Dp, Dp), weight_dtype)
    b_stack = jnp.zeros((L, 1, Dp), jnp.float32)
    for l, (w, b) in enumerate(params):
        din, dout = w.shape
        w_stack = w_stack.at[l, :din, :dout].set(w.astype(weight_dtype))
        b_stack = b_stack.at[l, 0, :dout].set(b.astype(jnp.float32))
    return w_stack, b_stack, Dp


def load_model_forward(x, head_params, packed=None, *, weight_dtype=jnp.float32):
    """forward(x) = heads(trunk(x)); trunk modeled as identity."""
    out = x  # trunk = identity
    if not head_params:
        return out  # heads = nn.Identity()
    if packed is None:
        packed = pack_head_params(head_params, weight_dtype=weight_dtype)
    w_stack, b_stack, _ = packed
    dout_final = head_params[-1][0].shape[1]
    y = fused_heads_pallas(out, w_stack, b_stack)
    return y[: out.shape[0], :dout_final]


if __name__ == "__main__":
    # Small, module-consistent shapes: batch=8, heads=[32, 64, 16].
    heads = [32, 64, 16]
    batch = 8

    key = jax.random.PRNGKey(0)
    key, kx = jax.random.split(key)
    x = jax.random.normal(kx, (batch, heads[0]), jnp.float32)

    head_params = init_heads_params(heads, key)
    packed = pack_head_params(head_params)  # weight_dtype=jnp.bfloat16 on v6e/v7x

    out = load_model_forward(x, head_params, packed)
    out = jax.block_until_ready(out)

    # Reference check in plain JAX (same math as PyTorch y = x @ W.T + b).
    ref = x
    for idx, (w, b) in enumerate(head_params):
        ref = ref @ w + b
        if idx != len(head_params) - 1:
            ref = jnp.maximum(ref, 0.0)
    assert out.shape == (batch, heads[-1])
    assert jnp.allclose(out, ref, atol=1e-5, rtol=1e-5)

    print("KERNEL_OK")
</pallas_src>

<mosaic_0001>
module attributes {stable_mosaic.version = 11 : i64} {
  func.func @_fused_mlp_kernel(%arg0: memref<8x128xf32, #tpu.memory_space<vmem>>, %arg1: memref<2x128x128xf32, #tpu.memory_space<vmem>>, %arg2: memref<2x1x128xf32, #tpu.memory_space<vmem>>, %arg3: memref<8x128xf32, #tpu.memory_space<vmem>>) attributes {dimension_semantics = [], scalar_prefetch = 0 : i64, scratch_operands = 0 : i64, tpu.core_type = #tpu.core_type<tc>} {
    %c0 = arith.constant 0 : index
    %c0_0 = arith.constant 0 : index
    %0 = vector.load %arg0[%c0, %c0_0] : memref<8x128xf32, #tpu.memory_space<vmem>>, vector<8x128xf32>
    %c0_1 = arith.constant 0 : index
    %c0_2 = arith.constant 0 : index
    %c0_3 = arith.constant 0 : index
    %1 = vector.load %arg1[%c0_1, %c0_2, %c0_3] : memref<2x128x128xf32, #tpu.memory_space<vmem>>, vector<1x128x128xf32>
    %2 = vector.shape_cast %1 : vector<1x128x128xf32> to vector<128x128xf32>
    %cst = arith.constant dense<0.000000e+00> : vector<8x128xf32>
    %3 = tpu.matmul %0, %2, %cst {dimension_numbers = #tpu.dot_dimension_numbers<[1], [0], [0], [1], [0, 0, 1, 1], [], []>} : vector<8x128xf32>, vector<128x128xf32>, vector<8x128xf32> -> vector<8x128xf32>
    %c0_4 = arith.constant 0 : index
    %c0_5 = arith.constant 0 : index
    %c0_6 = arith.constant 0 : index
    %4 = vector.load %arg2[%c0_4, %c0_5, %c0_6] : memref<2x1x128xf32, #tpu.memory_space<vmem>>, vector<1x1x128xf32>
    %5 = vector.shape_cast %4 : vector<1x1x128xf32> to vector<1x128xf32>
    %6 = vector.broadcast %5 : vector<1x128xf32> to vector<8x128xf32>
    %7 = arith.addf %3, %6 : vector<8x128xf32>
    %cst_7 = arith.constant 0.000000e+00 : f32
    %8 = vector.broadcast %cst_7 : f32 to vector<8x128xf32>
    %9 = arith.maximumf %7, %8 : vector<8x128xf32>
    %c1 = arith.constant 1 : index
    %c0_8 = arith.constant 0 : index
    %c0_9 = arith.constant 0 : index
    %10 = vector.load %arg1[%c1, %c0_8, %c0_9] : memref<2x128x128xf32, #tpu.memory_space<vmem>>, vector<1x128x128xf32>
    %11 = vector.shape_cast %10 : vector<1x128x128xf32> to vector<128x128xf32>
    %cst_10 = arith.constant dense<0.000000e+00> : vector<8x128xf32>
    %12 = tpu.matmul %9, %11, %cst_10 {dimension_numbers = #tpu.dot_dimension_numbers<[1], [0], [0], [1], [0, 0, 1, 1], [], []>} : vector<8x128xf32>, vector<128x128xf32>, vector<8x128xf32> -> vector<8x128xf32>
    %c1_11 = arith.constant 1 : index
    %c0_12 = arith.constant 0 : index
    %c0_13 = arith.constant 0 : index
    %13 = vector.load %arg2[%c1_11, %c0_12, %c0_13] : memref<2x1x128xf32, #tpu.memory_space<vmem>>, vector<1x1x128xf32>
    %14 = vector.shape_cast %13 : vector<1x1x128xf32> to vector<1x128xf32>
    %15 = vector.broadcast %14 : vector<1x128xf32> to vector<8x128xf32>
    %16 = arith.addf %12, %15 : vector<8x128xf32>
    %c0_14 = arith.constant 0 : index
    %c0_15 = arith.constant 0 : index
    %17 = vector.load %arg3[%c0_14, %c0_15] : memref<8x128xf32, #tpu.memory_space<vmem>>, vector<8x128xf32>
    tpu.vector_store %arg3[%c0_14, %c0_15], %16 {strides = array<i32>} : memref<8x128xf32, #tpu.memory_space<vmem>>, vector<8x128xf32>,
    return
  }
}

</mosaic_0001>

<llo_original>
// kernel: tpu_custom_call.1
$region0: #{tpu_custom_call.1}
  #allocation0 [shape = 'u32[]', space=smem, size = 0x4, offset = 0x4, fixed_abs, tag = 'smem constant byte address 0x4 - core index']
  #allocation1 [shape = 'u32[144,128]{1,0:T(1,128)}', space=vmem, size = 0x12000, scoped, tag = 'internal scratch']
  %s0 = inlined_call_operand.hbm [shape: f32[8,128], index: 0, kind: input, shape index: {}]
  %s1 = inlined_call_operand.hbm [shape: f32[2,128,128], index: 1, kind: input, shape index: {}]
  %s2 = inlined_call_operand.vmem [shape: f32[2,1,128], index: 2, kind: input, shape index: {}]
  %s3 = inlined_call_operand.hbm [shape: f32[8,128], index: 3, kind: output, shape index: {}]
  %s4 = sld [smem:[#allocation0]]
  $region30: #{tpu_custom_call.1} parent=0
    _
  %s6 = ssub.s32 1, %s4
  %s7 = scalar_select 0, %s6, %s4
  $region1: #{tpu_custom_call.1} parent=0
    #allocation2 [shape = 'u8[4096]{0}', space=vmem, size = 0x1000, scoped, tag = 'input window, operand 0, single buffered']
    #allocation3 [shape = 's32[1]{0}', space=sflag, size = 0x4, scoped, tag = 'scoped memory for tpu_custom_call.1']
    #allocation4 [shape = 's32[1]{0}', space=sflag, size = 0x4, scoped, tag = 'scoped memory for tpu_custom_call.1']
    #allocation5 [shape = 'u8[131072]{0}', space=vmem, size = 0x20000, scoped, tag = 'input window, operand 1, single buffered']
    #allocation6 [shape = 's32[1]{0}', space=sflag, size = 0x4, scoped, tag = 'scoped memory for tpu_custom_call.1']
    #allocation7 [shape = 'u8[4096]{0}', space=vmem, size = 0x1000, scoped, tag = 'output window, operand 0, single buffered']
    %8 = vsyncpa [#allocation3], 0
    %9 = vsyncpa [#allocation6], 0
    %10 = vsyncpa [#allocation4], 0
    // Predicated region
    $region2: #{tpu_custom_call.1} parent=1 // pred_check
      _
    $region3: #{tpu_custom_call.1} parent=1 // pred_check_branch
      %12 = sbr.rel (0) target = $region5
    $region4: #{tpu_custom_call.1} parent=1 // pred_region
      %s14 = ssub.s32 128, 128
      %15 = vsyncadd [#allocation3], %s14
      %s17 = sshll.u32 [#allocation2], 4
      %s18 = int_to_ptr.vmem [resolvable:$true] %s17
      %20 = dma.hbm_to_vmem [thread:$0]  %s0, 128, %s18, [#allocation3]
    $region5: #{tpu_custom_call.1} parent=1 // pred_fallthru
      _
    // Predicated region
    $region6: #{tpu_custom_call.1} parent=1 // pred_check
      _
    $region7: #{tpu_custom_call.1} parent=1 // pred_check_branch
      %22 = sbr.rel (0) target = $region9
    $region8: #{tpu_custom_call.1} parent=1 // pred_region
      %s24 = ssub.s32 4096, 4096
      %25 = vsyncadd [#allocation6], %s24
      %s26 = sshll.u32 [#allocation5], 4
      %s27 = int_to_ptr.vmem [resolvable:$true] %s26
      %32 = dma.hbm_to_vmem [thread:$0]  %s1, 4096, %s27, [#allocation6], 128, 128, 8
    $region9: #{tpu_custom_call.1} parent=1 // pred_fallthru
      _
    // Predicated region
    $region10: #{tpu_custom_call.1} parent=1 // pred_check
      _
    $region11: #{tpu_custom_call.1} parent=1 // pred_check_branch
      %34 = sbr.rel (0) target = $region13
    $region12: #{tpu_custom_call.1} parent=1 // pred_region
      _
    $region13: #{tpu_custom_call.1} parent=1 // pred_fallthru
      _
    // Predicated region
    $region14: #{tpu_custom_call.1} parent=1 // pred_check
      _
    $region15: #{tpu_custom_call.1} parent=1 // pred_check_branch
      %36 = sbr.rel (0) target = $region17
    $region16: #{tpu_custom_call.1} parent=1 // pred_region
      %37 = dma.done [#allocation3], 128
    $region17: #{tpu_custom_call.1} parent=1 // pred_fallthru
      _
    // Predicated region
    $region18: #{tpu_custom_call.1} parent=1 // pred_check
      _
    $region19: #{tpu_custom_call.1} parent=1 // pred_check_branch
      %39 = sbr.rel (0) target = $region21
    $region20: #{tpu_custom_call.1} parent=1 // pred_region
      %40 = dma.done [#allocation6], 4096
    $region21: #{tpu_custom_call.1} parent=1 // pred_fallthru
      _
    %v41 = vld [vmem:[#allocation2] sm:$0xff]
    %v42 = vld [vmem:[#allocation5] sm:$0xff]
    %v43 = vld [vmem:[#allocation5 + $0x8] sm:$0xff]
    %v44 = vld [vmem:[#allocation5 + $0x10] sm:$0xff]
    %v45 = vld [vmem:[#allocation5 + $0x18] sm:$0xff]
    %v46 = vld [vmem:[#allocation5 + $0x20] sm:$0xff]
    %v47 = vld [vmem:[#allocation5 + $0x28] sm:$0xff]
    %v48 = vld [vmem:[#allocation5 + $0x30] sm:$0xff]
    %v49 = vld [vmem:[#allocation5 + $0x38] sm:$0xff]
    %v50 = vld [vmem:[#allocation5 + $0x40] sm:$0xff]
    %v51 = vld [vmem:[#allocation5 + $0x48] sm:$0xff]
    %v52 = vld [vmem:[#allocation5 + $0x50] sm:$0xff]
    %v53 = vld [vmem:[#allocation5 + $0x58] sm:$0xff]
    %v54 = vld [vmem:[#allocation5 + $0x60] sm:$0xff]
    %v55 = vld [vmem:[#allocation5 + $0x68] sm:$0xff]
    %v56 = vld [vmem:[#allocation5 + $0x70] sm:$0xff]
    %v57 = vld [vmem:[#allocation5 + $0x78] sm:$0xff]
    %v58 = vld [vmem:[%s2] sm:$0x1]
    %v60 = vlaneseq
    %v61 = vshrl.u32 %v60, 7
    %v62 = vsub.s32 0, %v61
    %v63 = vrot.slane %v58, %v62
    %65 = vmatprep.subr.mxu0 0.0
    %66 = vmatpush1.msra.mxu0 %v42
    %67 = vmatprep.subr.mxu0 0.0
    %68 = vmatpush1.msra.mxu0 %v43
    %69 = vmatprep.subr.mxu0 0.0
    %70 = vmatpush1.msra.mxu0 %v44
    %71 = vmatprep.subr.mxu0 0.0
    %72 = vmatpush1.msra.mxu0 %v45
    %73 = vmatprep.subr.mxu0 0.0
    %74 = vmatpush1.msra.mxu0 %v46
    %75 = vmatprep.subr.mxu0 0.0
    %76 = vmatpush1.msra.mxu0 %v47
    %77 = vmatprep.subr.mxu0 0.0
    %78 = vmatpush1.msra.mxu0 %v48
    %79 = vmatprep.subr.mxu0 0.0
    %80 = vmatpush1.msra.mxu0 %v49
    %81 = vmatprep.subr.mxu0 0.0
    %82 = vmatpush1.msra.mxu0 %v50
    %83 = vmatprep.subr.mxu0 0.0
    %84 = vmatpush1.msra.mxu0 %v51
    %85 = vmatprep.subr.mxu0 0.0
    %86 = vmatpush1.msra.mxu0 %v52
    %87 = vmatprep.subr.mxu0 0.0
    %88 = vmatpush1.msra.mxu0 %v53
    %89 = vmatprep.subr.mxu0 0.0
    %90 = vmatpush1.msra.mxu0 %v54
    %91 = vmatprep.subr.mxu0 0.0
    %92 = vmatpush1.msra.mxu0 %v55
    %93 = vmatprep.subr.mxu0 0.0
    %94 = vmatpush1.msra.mxu0 %v56
    %95 = vmatprep.subr.mxu0 0.0
    %96 = vmatpush1.msra.mxu0 %v57
    %97 = vmatprep.subr.mxu0 0.0
    %98 = vmatpush1.msra.mxu0 0.0
    %99 = vmatprep.subr.mxu0 0.0
    %100 = vmatpush1.msra.mxu0 0.0
    %101 = vmatprep.subr.mxu0 0.0
    %102 = vmatpush1.msra.mxu0 0.0
    %103 = vmatprep.subr.mxu0 0.0
    %104 = vmatpush1.msra.mxu0 0.0
    %105 = vmatprep.subr.mxu0 0.0
    %106 = vmatpush1.msra.mxu0 0.0
    %107 = vmatprep.subr.mxu0 0.0
    %108 = vmatpush1.msra.mxu0 0.0
    %109 = vmatprep.subr.mxu0 0.0
    %110 = vmatpush1.msra.mxu0 0.0
    %111 = vmatprep.subr.mxu0 0.0
    %112 = vmatpush1.msra.mxu0 0.0
    %113 = vmatprep.subr.mxu0 0.0
    %114 = vmatpush1.msra.mxu0 0.0
    %115 = vmatprep.subr.mxu0 0.0
    %116 = vmatpush1.msra.mxu0 0.0
    %117 = vmatprep.subr.mxu0 0.0
    %118 = vmatpush1.msra.mxu0 0.0
    %119 = vmatprep.subr.mxu0 0.0
    %120 = vmatpush1.msra.mxu0 0.0
    %121 = vmatprep.subr.mxu0 0.0
    %122 = vmatpush1.msra.mxu0 0.0
    %123 = vmatprep.subr.mxu0 0.0
    %124 = vmatpush1.msra.mxu0 0.0
    %125 = vmatprep.subr.mxu0 0.0
    %126 = vmatpush1.msra.mxu0 0.0
    %127 = vmatprep.subr.mxu0 0.0
    %128 = vmatpush1.msra.mxu0 0.0
    %129 = vmatprep.mubr.f32.mxu0 0.0
    %130 = vmatmul.mubr.f32.gmra.mrb[0].mxu0 %v41
    %v131 = vpop.f32.mrb[0].mxu0
    %v132 = vadd.f32 %v63, %v131
    %v133 = vpop.f32.mrb[0].mxu0
    %134 = vdwg.mxu0
    %v135 = vmax.f32 %v132, 0.0
    %s136 = scalar_lea.vmem [#allocation5], 128
    %v137 = vld [vmem:[%s136] sm:$0xff]
    %v138 = vld [vmem:[%s136 + $0x8] sm:$0xff]
    %v139 = vld [vmem:[%s136 + $0x10] sm:$0xff]
    %v140 = vld [vmem:[%s136 + $0x18] sm:$0xff]
    %v141 = vld [vmem:[%s136 + $0x20] sm:$0xff]
    %v142 = vld [vmem:[%s136 + $0x28] sm:$0xff]
    %v143 = vld [vmem:[%s136 + $0x30] sm:$0xff]
    %v144 = vld [vmem:[%s136 + $0x38] sm:$0xff]
    %v145 = vld [vmem:[%s136 + $0x40] sm:$0xff]
    %v146 = vld [vmem:[%s136 + $0x48] sm:$0xff]
    %v147 = vld [vmem:[%s136 + $0x50] sm:$0xff]
    %v148 = vld [vmem:[%s136 + $0x58] sm:$0xff]
    %v149 = vld [vmem:[%s136 + $0x60] sm:$0xff]
    %v150 = vld [vmem:[%s136 + $0x68] sm:$0xff]
    %v151 = vld [vmem:[%s136 + $0x70] sm:$0xff]
    %v152 = vld [vmem:[%s136 + $0x78] sm:$0xff]
    %s153 = scalar_lea.vmem %s2, 1
    %v154 = vld [vmem:[%s153] sm:$0x1]
    %v156 = vlaneseq
    %v157 = vshrl.u32 %v156, 7
    %v158 = vsub.s32 0, %v157
    %v159 = vrot.slane %v154, %v158
    %161 = vmatprep.subr.mxu0 0.0
    %162 = vmatpush1.msra.mxu0 %v137
    %163 = vmatprep.subr.mxu0 0.0
    %164 = vmatpush1.msra.mxu0 %v138
    %165 = vmatprep.subr.mxu0 0.0
    %166 = vmatpush1.msra.mxu0 %v139
    %167 = vmatprep.subr.mxu0 0.0
    %168 = vmatpush1.msra.mxu0 %v140
    %169 = vmatprep.subr.mxu0 0.0
    %170 = vmatpush1.msra.mxu0 %v141
    %171 = vmatprep.subr.mxu0 0.0
    %172 = vmatpush1.msra.mxu0 %v142
    %173 = vmatprep.subr.mxu0 0.0
    %174 = vmatpush1.msra.mxu0 %v143
    %175 = vmatprep.subr.mxu0 0.0
    %176 = vmatpush1.msra.mxu0 %v144
    %177 = vmatprep.subr.mxu0 0.0
    %178 = vmatpush1.msra.mxu0 %v145
    %179 = vmatprep.subr.mxu0 0.0
    %180 = vmatpush1.msra.mxu0 %v146
    %181 = vmatprep.subr.mxu0 0.0
    %182 = vmatpush1.msra.mxu0 %v147
    %183 = vmatprep.subr.mxu0 0.0
    %184 = vmatpush1.msra.mxu0 %v148
    %185 = vmatprep.subr.mxu0 0.0
    %186 = vmatpush1.msra.mxu0 %v149
    %187 = vmatprep.subr.mxu0 0.0
    %188 = vmatpush1.msra.mxu0 %v150
    %189 = vmatprep.subr.mxu0 0.0
    %190 = vmatpush1.msra.mxu0 %v151
    %191 = vmatprep.subr.mxu0 0.0
    %192 = vmatpush1.msra.mxu0 %v152
    %193 = vmatprep.subr.mxu0 0.0
    %194 = vmatpush1.msra.mxu0 0.0
    %195 = vmatprep.subr.mxu0 0.0
    %196 = vmatpush1.msra.mxu0 0.0
    %197 = vmatprep.subr.mxu0 0.0
    %198 = vmatpush1.msra.mxu0 0.0
    %199 = vmatprep.subr.mxu0 0.0
    %200 = vmatpush1.msra.mxu0 0.0
    %201 = vmatprep.subr.mxu0 0.0
    %202 = vmatpush1.msra.mxu0 0.0
    %203 = vmatprep.subr.mxu0 0.0
    %204 = vmatpush1.msra.mxu0 0.0
    %205 = vmatprep.subr.mxu0 0.0
    %206 = vmatpush1.msra.mxu0 0.0
    %207 = vmatprep.subr.mxu0 0.0
    %208 = vmatpush1.msra.mxu0 0.0
    %209 = vmatprep.subr.mxu0 0.0
    %210 = vmatpush1.msra.mxu0 0.0
    %211 = vmatprep.subr.mxu0 0.0
    %212 = vmatpush1.msra.mxu0 0.0
    %213 = vmatprep.subr.mxu0 0.0
    %214 = vmatpush1.msra.mxu0 0.0
    %215 = vmatprep.subr.mxu0 0.0
    %216 = vmatpush1.msra.mxu0 0.0
    %217 = vmatprep.subr.mxu0 0.0
    %218 = vmatpush1.msra.mxu0 0.0
    %219 = vmatprep.subr.mxu0 0.0
    %220 = vmatpush1.msra.mxu0 0.0
    %221 = vmatprep.subr.mxu0 0.0
    %222 = vmatpush1.msra.mxu0 0.0
    %223 = vmatprep.subr.mxu0 0.0
    %224 = vmatpush1.msra.mxu0 0.0
    %225 = vmatprep.mubr.f32.mxu0 0.0
    %226 = vmatmul.mubr.f32.gmra.mrb[0].mxu0 %v135
    %v227 = vpop.f32.mrb[0].mxu0
    %v228 = vadd.f32 %v159, %v227
    %v229 = vpop.f32.mrb[0].mxu0
    %230 = vdwg.mxu0
    %231 = vst [vmem:[#allocation7] sm:$0xff] %v228
    // Predicated region
    $region22: #{tpu_custom_call.1} parent=1 // pred_check
      _
    $region23: #{tpu_custom_call.1} parent=1 // pred_check_branch
      %233 = sbr.rel (0) target = $region25
    $region24: #{tpu_custom_call.1} parent=1 // pred_region
      %s235 = ssub.s32 128, 128
      %236 = vsyncadd [#allocation4], %s235
      %s238 = sshll.u32 [#allocation7], 4
      %s239 = int_to_ptr.vmem [resolvable:$true] %s238
      %241 = dma.vmem_to_hbm [thread:$0]  %s239, 128, %s3, [#allocation4]
    $region25: #{tpu_custom_call.1} parent=1 // pred_fallthru
      _
    // Predicated region
    $region26: #{tpu_custom_call.1} parent=1 // pred_check
      _
    $region27: #{tpu_custom_call.1} parent=1 // pred_check_branch
      %243 = sbr.rel (0) target = $region29
    $region28: #{tpu_custom_call.1} parent=1 // pred_region
      %244 = dma.done [#allocation4], 128
    $region29: #{tpu_custom_call.1} parent=1 // pred_fallthru
      _
    %245 = vsyncpa [#allocation3], 1
    %246 = vsyncpa [#allocation6], 1
    %247 = vsyncpa [#allocation4], 1

</llo_original>
